<compile_context>
chip_gen: v7x
topology: tpu7x:2x2x1
jax: 0.10.0
libtpu: 0.0.40
codegen_flags: <defaults>
</compile_context>

<pallas_src>
import functools

import jax
import jax.numpy as jnp
from jax.experimental import pallas as pl
from jax.experimental.pallas import tpu as pltpu


def _vmem_capacity_bytes() -> int:
    """Physical VMEM per TensorCore; conservative fallback if the query fails."""
    try:
        return int(pltpu.get_tpu_info().vmem_capacity_bytes)
    except Exception:
        return 64 * 1024 * 1024  # v7x per-TC size == the smallest generation


def _rms_kernel(x_ref, w_ref, o_ref, *, eps):
    # x_ref: (tm, H) in I/O dtype; w_ref: (1, H) already pre-cast to I/O dtype.
    x32 = x_ref[...].astype(jnp.float32)
    var = jnp.mean(x32 * x32, axis=-1, keepdims=True)
    inv = jax.lax.rsqrt(var + eps)
    # Re-read the tile instead of keeping the full f32 copy live across the
    # reduction (less VMEM/vreg pressure; the vld slot has slack - mem-bound).
    xn = (x_ref[...].astype(jnp.float32) * inv).astype(o_ref.dtype)
    # NOTE: multiply-by-weight intentionally happens in the I/O dtype after
    # the downcast, matching the lightvllm reference numerics exactly.
    o_ref[...] = xn * w_ref[...]


def _add_rms_kernel(x_ref, r_ref, w_ref, o_ref, res_ref, *, eps):
    # Fused residual-add + RMSNorm.
    xs = x_ref[...].astype(jnp.float32) + r_ref[...].astype(jnp.float32)
    res_ref[...] = xs.astype(res_ref.dtype)  # new residual written first
    var = jnp.mean(xs * xs, axis=-1, keepdims=True)
    inv = jax.lax.rsqrt(var + eps)
    # Recompute the exact f32 sum (cheap VPU work hidden under DMA) rather
    # than holding the whole (tm, H) f32 tile live across the reduction.
    xs2 = x_ref[...].astype(jnp.float32) + r_ref[...].astype(jnp.float32)
    o_ref[...] = (xs2 * inv).astype(o_ref.dtype) * w_ref[...]


class RMSNorm:
    """RMSNorm / fused add+RMSNorm, matching lightvllm's layernorm semantics."""

    def __init__(self, hidden_size: int, eps: float = 1e-6):
        self.hidden_size = hidden_size
        self.eps = eps
        # Same deterministic init as torch.ones(hidden_size).
        self.weight = jnp.ones((hidden_size,), dtype=jnp.float32)

    # --- tiling / VMEM policy -------------------------------------------
    def _tile_and_vmem(self, seq: int, dtype, num_io_tiles: int):
        """Pick block rows (tm) and an explicit vmem_limit_bytes.

        Budget: each blocked I/O array is double-buffered (2 x tm x H x
        dtype_bytes) plus ~2 f32 intermediate tiles inside the kernel body.
        Tile size is the dominant lever for this HBM-bound kernel, so take
        the largest tm that fits ~75% of physical VMEM, capped at 1024 rows
        (the measured BW roofline flattens past ~512-1024 rows).
        """
        H = self.hidden_size
        dtype_bytes = jnp.dtype(dtype).itemsize
        sublane = max(8, 32 // max(dtype_bytes, 1))  # 8 f32 / 16 bf16 / 32 i8

        vmem_cap = _vmem_capacity_bytes()
        budget = (vmem_cap * 3) // 4  # headroom for compiler-internal scratch

        per_row = num_io_tiles * 2 * H * dtype_bytes + 2 * H * 4
        tm = budget // per_row
        tm = min(tm, 1024)
        tm = min(tm, seq)

        # Keep >= ~4 grid steps so the single "parallel" axis can shard across
        # both TensorCores on v7x (harmless on single-TC v5e/v6e).
        if seq >= 4 * sublane:
            tm = min(tm, pl.cdiv(seq, 4))

        if tm >= seq:
            tm = seq  # one full block; any row count is allowed
        else:
            tm = max(sublane, (tm // sublane) * sublane)

        need = tm * per_row
        vmem_limit = int(min((vmem_cap * 9) // 10,
                             max(need + (4 << 20), 32 << 20)))
        return tm, vmem_limit

    def _specs(self, seq: int, tm: int):
        H = self.hidden_size
        # For best store bandwidth H should be a multiple of 128 (lane-dense
        # stores); standard hidden sizes (4096/8192/...) satisfy this. Other H
        # still works correctly because the block spans the full hidden dim.
        x_spec = pl.BlockSpec((tm, H), lambda i: (i, 0))
        w_spec = pl.BlockSpec((1, H), lambda i: (0, 0))
        grid = (pl.cdiv(seq, tm),)
        return grid, x_spec, w_spec

    # --- forward paths ----------------------------------------------------
    def rms_forward(self, x):
        seq, H = x.shape
        assert H == self.hidden_size
        tm, vmem_limit = self._tile_and_vmem(seq, x.dtype, num_io_tiles=2)
        grid, x_spec, w_spec = self._specs(seq, tm)
        w = self.weight.astype(x.dtype).reshape(1, H)  # pre-cast once on host
        return pl.pallas_call(
            functools.partial(_rms_kernel, eps=self.eps),
            out_shape=jax.ShapeDtypeStruct((seq, H), x.dtype),
            grid_spec=pltpu.PrefetchScalarGridSpec(
                num_scalar_prefetch=0,
                grid=grid,
                in_specs=[x_spec, w_spec],
                out_specs=x_spec,
            ),
            compiler_params=pltpu.CompilerParams(
                dimension_semantics=("parallel",),
                vmem_limit_bytes=vmem_limit,
            ),
        )(x, w)

    def add_rms_forward(self, x, residual):
        seq, H = x.shape
        assert H == self.hidden_size
        assert residual.shape == x.shape and residual.dtype == x.dtype
        tm, vmem_limit = self._tile_and_vmem(seq, x.dtype, num_io_tiles=4)
        grid, x_spec, w_spec = self._specs(seq, tm)
        w = self.weight.astype(x.dtype).reshape(1, H)  # pre-cast once on host
        out, new_residual = pl.pallas_call(
            functools.partial(_add_rms_kernel, eps=self.eps),
            out_shape=(
                jax.ShapeDtypeStruct((seq, H), x.dtype),
                jax.ShapeDtypeStruct((seq, H), x.dtype),
            ),
            grid_spec=pltpu.PrefetchScalarGridSpec(
                num_scalar_prefetch=0,
                grid=grid,
                in_specs=[x_spec, x_spec, w_spec],
                out_specs=(x_spec, x_spec),
            ),
            # Alias residual (input 1) to the new-residual output (output 1):
            # no second seq x H HBM allocation; truly in place when the caller
            # donates the buffer (vLLM-style decode loop), copy-on-need else.
            input_output_aliases={1: 1},
            compiler_params=pltpu.CompilerParams(
                dimension_semantics=("parallel",),
                vmem_limit_bytes=vmem_limit,
            ),
        )(x, residual, w)
        return out, new_residual

    def __call__(self, x, residual=None):
        if residual is None:
            return self.rms_forward(x)
        return self.add_rms_forward(x, residual)


# ---------------------------------------------------------------------------
def _ref_rms(x, w, eps):
    orig = x.dtype
    xf = x.astype(jnp.float32)
    var = jnp.mean(xf * xf, axis=-1, keepdims=True)
    xn = (xf * jax.lax.rsqrt(var + eps)).astype(orig)
    return xn * w.astype(orig)


if __name__ == "__main__":
    key = jax.random.PRNGKey(0)
    k1, k2, k3, k4 = jax.random.split(key, 4)

    # --- small f32 case (seq=8, hidden=32) --------------------------------
    seq, hidden = 8, 32
    x = jax.random.normal(k1, (seq, hidden), dtype=jnp.float32)
    residual = jax.random.normal(k2, (seq, hidden), dtype=jnp.float32)
    norm = RMSNorm(hidden, eps=1e-6)

    # References computed up-front (independent of any buffer aliasing).
    y_ref = _ref_rms(x, norm.weight, norm.eps)
    xr = x.astype(jnp.float32) + residual.astype(jnp.float32)
    y2_ref = _ref_rms(xr, norm.weight, norm.eps)
    res_ref = xr.astype(x.dtype)

    y = jax.block_until_ready(norm(x))
    assert jnp.allclose(y, y_ref, atol=1e-5, rtol=1e-5)

    y2, res2 = norm(x, residual)
    y2 = jax.block_until_ready(y2)
    res2 = jax.block_until_ready(res2)
    assert jnp.allclose(res2, res_ref, atol=1e-5, rtol=1e-5)
    assert jnp.allclose(y2, y2_ref, atol=1e-5, rtol=1e-5)

    # --- bf16 multi-block case (exercises grid > 1 + residual aliasing) ---
    seq2, hidden2 = 128, 256
    xb = jax.random.normal(k3, (seq2, hidden2), dtype=jnp.bfloat16)
    rb = jax.random.normal(k4, (seq2, hidden2), dtype=jnp.bfloat16)
    norm2 = RMSNorm(hidden2, eps=1e-6)

    yb_ref = _ref_rms(xb, norm2.weight, norm2.eps)
    xrb = xb.astype(jnp.float32) + rb.astype(jnp.float32)
    yb2_ref = _ref_rms(xrb, norm2.weight, norm2.eps)
    rb2_ref = xrb.astype(xb.dtype)

    yb = jax.block_until_ready(norm2(xb))
    yb2, rb2 = norm2(xb, rb)
    yb2 = jax.block_until_ready(yb2)
    rb2 = jax.block_until_ready(rb2)

    tol = dict(atol=2e-2, rtol=2e-2)
    assert jnp.allclose(yb.astype(jnp.float32), yb_ref.astype(jnp.float32), **tol)
    assert jnp.allclose(rb2.astype(jnp.float32), rb2_ref.astype(jnp.float32), **tol)
    assert jnp.allclose(yb2.astype(jnp.float32), yb2_ref.astype(jnp.float32), **tol)

    print("KERNEL_OK")
</pallas_src>

<mosaic_0001>
module attributes {stable_mosaic.version = 11 : i64} {
  func.func @_rms_kernel(%arg0: i32, %arg1: memref<8x32xf32, #tpu.memory_space<vmem>>, %arg2: memref<1x32xf32, #tpu.memory_space<vmem>>, %arg3: memref<8x32xf32, #tpu.memory_space<vmem>>) attributes {dimension_semantics = [#tpu.dimension_semantics<parallel>], iteration_bounds = array<i64: 1>, scalar_prefetch = 0 : i64, scratch_operands = 0 : i64, tpu.core_type = #tpu.core_type<tc>, window_params = [{transform_indices = @transform_0, window_bounds = array<i64: 8, 32>}, {pipeline_mode = #tpu.pipeline_mode<synchronous>, transform_indices = @transform_1, window_bounds = array<i64: 1, 32>}, {transform_indices = @transform_2, window_bounds = array<i64: 8, 32>}]} {
    %c0 = arith.constant 0 : index
    %c0_0 = arith.constant 0 : index
    %0 = vector.load %arg1[%c0, %c0_0] : memref<8x32xf32, #tpu.memory_space<vmem>>, vector<8x32xf32>
    %1 = arith.mulf %0, %0 : vector<8x32xf32>
    %cst = arith.constant dense<0.000000e+00> : vector<8xf32>
    %2 = vector.multi_reduction <add>, %1, %cst [1] : vector<8x32xf32> to vector<8xf32>
    %3 = vector.shape_cast %2 : vector<8xf32> to vector<8x1xf32>
    %cst_1 = arith.constant 3.200000e+01 : f32
    %4 = vector.broadcast %cst_1 : f32 to vector<8x1xf32>
    %5 = arith.divf %3, %4 : vector<8x1xf32>
    %cst_2 = arith.constant 9.99999997E-7 : f32
    %6 = vector.broadcast %cst_2 : f32 to vector<8x1xf32>
    %7 = arith.addf %5, %6 : vector<8x1xf32>
    %8 = math.rsqrt %7 : vector<8x1xf32>
    %c0_3 = arith.constant 0 : index
    %c0_4 = arith.constant 0 : index
    %9 = vector.load %arg1[%c0_3, %c0_4] : memref<8x32xf32, #tpu.memory_space<vmem>>, vector<8x32xf32>
    %10 = vector.broadcast %8 : vector<8x1xf32> to vector<8x32xf32>
    %11 = arith.mulf %9, %10 : vector<8x32xf32>
    %c0_5 = arith.constant 0 : index
    %c0_6 = arith.constant 0 : index
    %12 = vector.load %arg2[%c0_5, %c0_6] : memref<1x32xf32, #tpu.memory_space<vmem>>, vector<1x32xf32>
    %13 = vector.broadcast %12 : vector<1x32xf32> to vector<8x32xf32>
    %14 = arith.mulf %11, %13 : vector<8x32xf32>
    %c0_7 = arith.constant 0 : index
    %c0_8 = arith.constant 0 : index
    %15 = vector.load %arg3[%c0_7, %c0_8] : memref<8x32xf32, #tpu.memory_space<vmem>>, vector<8x32xf32>
    tpu.vector_store %arg3[%c0_7, %c0_8], %14 {strides = array<i32>} : memref<8x32xf32, #tpu.memory_space<vmem>>, vector<8x32xf32>,
    return
  }
  func.func @transform_0(%arg0: i32) -> (i32, i32) {
    %c0_i32 = arith.constant 0 : i32
    %c0_i32_0 = arith.constant 0 : i32
    return %arg0, %c0_i32 : i32, i32
  }
  func.func @transform_1(%arg0: i32) -> (i32, i32) {
    %c0_i32 = arith.constant 0 : i32
    %c0_i32_0 = arith.constant 0 : i32
    %c0_i32_1 = arith.constant 0 : i32
    return %c0_i32, %c0_i32_0 : i32, i32
  }
  func.func @transform_2(%arg0: i32) -> (i32, i32) {
    %c0_i32 = arith.constant 0 : i32
    %c0_i32_0 = arith.constant 0 : i32
    return %arg0, %c0_i32 : i32, i32
  }
}

</mosaic_0001>

<llo_original>
// kernel: tpu_custom_call.1
$region0: #{tpu_custom_call.1}
  #allocation0 [shape = 'u32[]', space=smem, size = 0x4, offset = 0x4, fixed_abs, tag = 'smem constant byte address 0x4 - core index']
  #allocation1 [shape = 'u32[144,128]{1,0:T(1,128)}', space=vmem, size = 0x12000, scoped, tag = 'internal scratch']
  %s0 = inlined_call_operand.hbm [shape: f32[8,32], index: 0, kind: input, shape index: {}]
  %s1 = inlined_call_operand.vmem [shape: f32[1,32], index: 1, kind: input, shape index: {}]
  %s2 = inlined_call_operand.hbm [shape: f32[8,32], index: 2, kind: output, shape index: {}]
  %s3 = sld [smem:[#allocation0]]
  $region22: #{tpu_custom_call.1} parent=0
    _
  %s5 = ssub.s32 1, %s3
  %s6 = scalar_select 0, %s5, %s3
  $region1: #{tpu_custom_call.1} parent=0
    #allocation2 [shape = 'u8[4096]{0}', space=vmem, size = 0x1000, scoped, tag = 'input window, operand 0, single buffered']
    #allocation3 [shape = 's32[1]{0}', space=sflag, size = 0x4, scoped, tag = 'scoped memory for tpu_custom_call.1']
    #allocation4 [shape = 's32[1]{0}', space=sflag, size = 0x4, scoped, tag = 'scoped memory for tpu_custom_call.1']
    #allocation5 [shape = 'u8[4096]{0}', space=vmem, size = 0x1000, scoped, tag = 'output window, operand 0, single buffered']
    %7 = vsyncpa [#allocation3], 0
    %8 = vsyncpa [#allocation4], 0
    // Predicated region
    $region2: #{tpu_custom_call.1} parent=1 // pred_check
      _
    $region3: #{tpu_custom_call.1} parent=1 // pred_check_branch
      %10 = sbr.rel (0) target = $region5
    $region4: #{tpu_custom_call.1} parent=1 // pred_region
      %s12 = ssub.s32 128, 128
      %13 = vsyncadd [#allocation3], %s12
      %s15 = sshll.u32 [#allocation2], 4
      %s16 = int_to_ptr.vmem [resolvable:$true] %s15
      %18 = dma.hbm_to_vmem [thread:$0]  %s0, 128, %s16, [#allocation3]
    $region5: #{tpu_custom_call.1} parent=1 // pred_fallthru
      _
    // Predicated region
    $region6: #{tpu_custom_call.1} parent=1 // pred_check
      _
    $region7: #{tpu_custom_call.1} parent=1 // pred_check_branch
      %20 = sbr.rel (0) target = $region9
    $region8: #{tpu_custom_call.1} parent=1 // pred_region
      _
    $region9: #{tpu_custom_call.1} parent=1 // pred_fallthru
      _
    // Predicated region
    $region10: #{tpu_custom_call.1} parent=1 // pred_check
      _
    $region11: #{tpu_custom_call.1} parent=1 // pred_check_branch
      %22 = sbr.rel (0) target = $region13
    $region12: #{tpu_custom_call.1} parent=1 // pred_region
      %23 = dma.done [#allocation3], 128
    $region13: #{tpu_custom_call.1} parent=1 // pred_fallthru
      _
    %v24 = vld [vmem:[#allocation2] sm:$0xff]
    %v25 = vmul.f32 %v24, %v24
    %vm26 = vcmask 261120
    %v27 = vsel %vm26, %v25, 0.0
    %28 = vadd.xlane.f32.xlu0 %v27
    %v29 = vpop.xlane.xlu0 %28
    %v30 = vrcp.pop 32.0
    %v31 = vmul.f32 %v29, %v30
    %v32 = vadd.f32 %v31, 1e-06
    %v33 = vrsqrt.pop %v32
    %v34 = vmul.f32 %v24, %v33
    %v35 = vld [vmem:[%s1] sm:$0x1]
    %v37 = vlaneseq
    %v38 = vshrl.u32 %v37, 7
    %v39 = vsub.s32 0, %v38
    %v40 = vrot.slane %v35, %v39
    %v42 = vmul.f32 %v34, %v40
    %43 = vst.msk [vmem:[#allocation5] sm:$0xff] %vm26, %v42
    // Predicated region
    $region14: #{tpu_custom_call.1} parent=1 // pred_check
      _
    $region15: #{tpu_custom_call.1} parent=1 // pred_check_branch
      %45 = sbr.rel (0) target = $region17
    $region16: #{tpu_custom_call.1} parent=1 // pred_region
      %s47 = ssub.s32 128, 128
      %48 = vsyncadd [#allocation4], %s47
      %s50 = sshll.u32 [#allocation5], 4
      %s51 = int_to_ptr.vmem [resolvable:$true] %s50
      %53 = dma.vmem_to_hbm [thread:$0]  %s51, 128, %s2, [#allocation4]
    $region17: #{tpu_custom_call.1} parent=1 // pred_fallthru
      _
    // Predicated region
    $region18: #{tpu_custom_call.1} parent=1 // pred_check
      _
    $region19: #{tpu_custom_call.1} parent=1 // pred_check_branch
      %55 = sbr.rel (0) target = $region21
    $region20: #{tpu_custom_call.1} parent=1 // pred_region
      %56 = dma.done [#allocation4], 128
    $region21: #{tpu_custom_call.1} parent=1 // pred_fallthru
      _
    %57 = vsyncpa [#allocation3], 1
    %58 = vsyncpa [#allocation4], 1

</llo_original>
